<compile_context>
chip_gen: v7x
topology: tpu7x:2x2x1
jax: 0.10.0
libtpu: 0.0.40
codegen_flags: <defaults>
</compile_context>

<pallas_src>
import jax
import jax.numpy as jnp
from jax.experimental import pallas as pl
from jax.experimental.pallas import tpu as pltpu


def _round_up(x, m):
    return (x + m - 1) // m * m


def critic_kernel(x_ref,
                  w1_ref, b1_ref,
                  w2_ref, b2_ref,
                  w3_ref, b3_ref,
                  w4_ref, b4_ref,
                  w5_ref, b5_ref,
                  out_ref):
    # In-kernel bf16 cast of the f32 x tile (keeps wrapper-side HBM traffic at
    # f32 * size, no extra XLA pad/cast passes).
    x = x_ref[...].astype(jnp.bfloat16)

    # 4 MXU matmuls (bf16 in, f32 accumulate); bias + ReLU in f32 on the VPU.
    h = jnp.dot(x, w1_ref[...], preferred_element_type=jnp.float32)
    h = jnp.maximum(h + b1_ref[...], 0.0).astype(jnp.bfloat16)

    h = jnp.dot(h, w2_ref[...], preferred_element_type=jnp.float32)
    h = jnp.maximum(h + b2_ref[...], 0.0).astype(jnp.bfloat16)

    h = jnp.dot(h, w3_ref[...], preferred_element_type=jnp.float32)
    h = jnp.maximum(h + b3_ref[...], 0.0).astype(jnp.bfloat16)

    h = jnp.dot(h, w4_ref[...], preferred_element_type=jnp.float32)
    h = jnp.maximum(h + b4_ref[...], 0.0)            # (tile_b, 128) f32

    # Head: y[b] = sum_k h[b,k] * w5[k] + b5, produced lane-dense.
    # Transpose the fully (8,128)-aligned f32 activation (tile_b is a multiple
    # of 128), then reduce over sublanes -> (1, tile_b) row. XLU + VPU only;
    # avoids an N=1 MXU matmul and masked lane-1 stores.
    h_t = jnp.transpose(h)                           # (128, tile_b) f32
    y = jnp.sum(h_t * w5_ref[...], axis=0, keepdims=True)   # (1, tile_b)
    out_ref[...] = (y + b5_ref[...]).astype(out_ref.dtype)


def critic_forward(x, params, *, max_tile_b=1024):
    """x: (B, size) f32.  params: list of 5 (W, b) with W (in, out), b (1, out).

    Returns (B, 1) f32, matching the PyTorch Critic forward.
    """
    B, size = x.shape
    assert max_tile_b % 128 == 0 and max_tile_b >= 128

    # Batch tile: multiple of 128 (keeps the lane-dense output block and the
    # in-kernel transpose fully aligned). For throughput batches keep grid >= 2
    # so both v7x TensorCores get work; small batches run in one step.
    if B <= 128:
        tile_b = 128
    else:
        tile_b = min(max_tile_b, _round_up((B + 1) // 2, 128))
    B_p = _round_up(B, tile_b)
    num_tiles = B_p // tile_b

    # Zero-pad only the batch dim when ragged (zeros rows are sliced off).
    x_p = x if B_p == B else jnp.pad(x, ((0, B_p - B), (0, 0)))

    # Kernel operands: bf16 MXU weights, f32 biases, f32 head column.
    weight_args = []
    in_specs = [pl.BlockSpec((tile_b, size), lambda i: (i, 0))]
    for li, (w, b) in enumerate(params):
        if li < 4:
            w_k = w.astype(jnp.bfloat16)             # MXU operand
            b_k = b.astype(jnp.float32)              # (1, out) f32 bias row
        else:
            w_k = w.astype(jnp.float32)              # (128, 1) head column
            b_k = b.astype(jnp.float32)              # (1, 1)
        weight_args += [w_k, b_k]
        # Constant index_map -> weights stay VMEM-resident across the grid.
        in_specs.append(pl.BlockSpec(w_k.shape, lambda i: (0, 0)))
        in_specs.append(pl.BlockSpec(b_k.shape, lambda i: (0, 0)))

    # Lane-dense output: one (1, tile_b) row per grid step.
    out_spec = pl.BlockSpec((1, tile_b), lambda i: (0, i))

    # VMEM budget: double-buffered x tile + output row, resident (double
    # buffered) weights, f32/bf16 intermediates + transposed activation, with
    # headroom. Capped at 32 MiB (safe on v7x's 64 MiB per-TC VMEM).
    weight_bytes = sum(int(a.size) * a.dtype.itemsize for a in weight_args)
    x_tile_bytes = tile_b * size * 4
    out_tile_bytes = tile_b * 4
    act_bytes = tile_b * 256 * 4 * 4
    vmem_limit = (2 * (x_tile_bytes + out_tile_bytes)
                  + 2 * weight_bytes + act_bytes + (2 << 20))
    vmem_limit = int(min(max(vmem_limit, 8 << 20), 32 << 20))

    flops = 2 * B_p * (size * 256 + 256 * 256 + 256 * 128 + 128 * 128 + 128)
    bytes_accessed = B_p * size * 4 + weight_bytes + B_p * 4

    out = pl.pallas_call(
        critic_kernel,
        out_shape=jax.ShapeDtypeStruct((1, B_p), jnp.float32),
        grid_spec=pltpu.PrefetchScalarGridSpec(
            num_scalar_prefetch=0,
            grid=(num_tiles,),
            in_specs=in_specs,
            out_specs=out_spec,
        ),
        compiler_params=pltpu.CompilerParams(
            dimension_semantics=("parallel",),
            vmem_limit_bytes=vmem_limit,
        ),
        cost_estimate=pl.CostEstimate(
            flops=flops, transcendentals=0, bytes_accessed=bytes_accessed),
    )(x_p, *weight_args)

    # (1, B_p) row -> (B, 1) column, dropping padded batch rows.
    return out[0, :B][:, None]


def init_critic_params(size, key):
    """Deterministic init matching the layer shapes of Critic(size)."""
    dims = [size, 256, 256, 128, 128, 1]
    params = []
    for i in range(5):
        fan_in, fan_out = dims[i], dims[i + 1]
        key, kw, kb = jax.random.split(key, 3)
        bound = 1.0 / jnp.sqrt(fan_in)
        w = jax.random.uniform(kw, (fan_in, fan_out), jnp.float32, -bound, bound)
        b = jax.random.uniform(kb, (1, fan_out), jnp.float32, -bound, bound)
        params.append((w, b))
    return params


def critic_reference(x, params):
    h = x
    for i, (w, b) in enumerate(params):
        h = h @ w + b
        if i < len(params) - 1:
            h = jnp.maximum(h, 0.0)
    return h


if __name__ == "__main__":
    key = jax.random.PRNGKey(0)
    key, kx1, kx2 = jax.random.split(key, 3)

    size = 32
    params = init_critic_params(size, key)

    # Small latency-style batch (single grid step, tile_b=128, padded rows).
    B1 = 8
    x1 = jax.random.normal(kx1, (B1, size), jnp.float32)
    out1 = jax.block_until_ready(critic_forward(x1, params))
    ref1 = critic_reference(x1, params)
    assert out1.shape == (B1, 1)
    assert jnp.allclose(out1, ref1, atol=5e-2, rtol=5e-2), (
        f"mismatch (B=8): max abs diff {jnp.max(jnp.abs(out1 - ref1))}")

    # Larger non-aligned batch (tile_b=256, grid=2, batch padding, parallel axis).
    B2 = 300
    x2 = jax.random.normal(kx2, (B2, size), jnp.float32)
    out2 = jax.block_until_ready(critic_forward(x2, params))
    ref2 = critic_reference(x2, params)
    assert out2.shape == (B2, 1)
    assert jnp.allclose(out2, ref2, atol=5e-2, rtol=5e-2), (
        f"mismatch (B=300): max abs diff {jnp.max(jnp.abs(out2 - ref2))}")

    print("KERNEL_OK")
</pallas_src>

<mosaic_0001>
module attributes {stable_mosaic.version = 11 : i64} {
  func.func @critic_kernel(%arg0: i32, %arg1: memref<128x32xf32, #tpu.memory_space<vmem>>, %arg2: memref<32x256xbf16, #tpu.memory_space<vmem>>, %arg3: memref<1x256xf32, #tpu.memory_space<vmem>>, %arg4: memref<256x256xbf16, #tpu.memory_space<vmem>>, %arg5: memref<1x256xf32, #tpu.memory_space<vmem>>, %arg6: memref<256x128xbf16, #tpu.memory_space<vmem>>, %arg7: memref<1x128xf32, #tpu.memory_space<vmem>>, %arg8: memref<128x128xbf16, #tpu.memory_space<vmem>>, %arg9: memref<1x128xf32, #tpu.memory_space<vmem>>, %arg10: memref<128x1xf32, #tpu.memory_space<vmem>>, %arg11: memref<1x1xf32, #tpu.memory_space<vmem>>, %arg12: memref<1x128xf32, #tpu.memory_space<vmem>>) attributes {dimension_semantics = [#tpu.dimension_semantics<parallel>], iteration_bounds = array<i64: 1>, scalar_prefetch = 0 : i64, scratch_operands = 0 : i64, tpu.core_type = #tpu.core_type<tc>, window_params = [{transform_indices = @transform_0, window_bounds = array<i64: 128, 32>}, {pipeline_mode = #tpu.pipeline_mode<synchronous>, transform_indices = @transform_1, window_bounds = array<i64: 32, 256>}, {pipeline_mode = #tpu.pipeline_mode<synchronous>, transform_indices = @transform_2, window_bounds = array<i64: 1, 256>}, {pipeline_mode = #tpu.pipeline_mode<synchronous>, transform_indices = @transform_3, window_bounds = array<i64: 256, 256>}, {pipeline_mode = #tpu.pipeline_mode<synchronous>, transform_indices = @transform_4, window_bounds = array<i64: 1, 256>}, {pipeline_mode = #tpu.pipeline_mode<synchronous>, transform_indices = @transform_5, window_bounds = array<i64: 256, 128>}, {pipeline_mode = #tpu.pipeline_mode<synchronous>, transform_indices = @transform_6, window_bounds = array<i64: 1, 128>}, {pipeline_mode = #tpu.pipeline_mode<synchronous>, transform_indices = @transform_7, window_bounds = array<i64: 128, 128>}, {pipeline_mode = #tpu.pipeline_mode<synchronous>, transform_indices = @transform_8, window_bounds = array<i64: 1, 128>}, {pipeline_mode = #tpu.pipeline_mode<synchronous>, transform_indices = @transform_9, window_bounds = array<i64: 128, 1>}, {pipeline_mode = #tpu.pipeline_mode<synchronous>, transform_indices = @transform_10, window_bounds = array<i64: 1, 1>}, {transform_indices = @transform_11, window_bounds = array<i64: 1, 128>}]} {
    %c0 = arith.constant 0 : index
    %c0_0 = arith.constant 0 : index
    %0 = vector.load %arg1[%c0, %c0_0] : memref<128x32xf32, #tpu.memory_space<vmem>>, vector<128x32xf32>
    %1 = arith.truncf %0 : vector<128x32xf32> to vector<128x32xbf16>
    %c0_1 = arith.constant 0 : index
    %c0_2 = arith.constant 0 : index
    %2 = vector.load %arg2[%c0_1, %c0_2] : memref<32x256xbf16, #tpu.memory_space<vmem>>, vector<32x256xbf16>
    %cst = arith.constant dense<0.000000e+00> : vector<128x256xf32>
    %3 = tpu.matmul %1, %2, %cst {dimension_numbers = #tpu.dot_dimension_numbers<[1], [0], [0], [1], [0, 0, 1, 1], [], []>} : vector<128x32xbf16>, vector<32x256xbf16>, vector<128x256xf32> -> vector<128x256xf32>
    %c0_3 = arith.constant 0 : index
    %c0_4 = arith.constant 0 : index
    %4 = vector.load %arg3[%c0_3, %c0_4] : memref<1x256xf32, #tpu.memory_space<vmem>>, vector<1x256xf32>
    %5 = vector.broadcast %4 : vector<1x256xf32> to vector<128x256xf32>
    %6 = arith.addf %3, %5 : vector<128x256xf32>
    %cst_5 = arith.constant 0.000000e+00 : f32
    %7 = vector.broadcast %cst_5 : f32 to vector<128x256xf32>
    %8 = arith.maximumf %6, %7 : vector<128x256xf32>
    %9 = arith.truncf %8 : vector<128x256xf32> to vector<128x256xbf16>
    %c0_6 = arith.constant 0 : index
    %c0_7 = arith.constant 0 : index
    %10 = vector.load %arg4[%c0_6, %c0_7] : memref<256x256xbf16, #tpu.memory_space<vmem>>, vector<256x256xbf16>
    %cst_8 = arith.constant dense<0.000000e+00> : vector<128x256xf32>
    %11 = tpu.matmul %9, %10, %cst_8 {dimension_numbers = #tpu.dot_dimension_numbers<[1], [0], [0], [1], [0, 0, 1, 1], [], []>} : vector<128x256xbf16>, vector<256x256xbf16>, vector<128x256xf32> -> vector<128x256xf32>
    %c0_9 = arith.constant 0 : index
    %c0_10 = arith.constant 0 : index
    %12 = vector.load %arg5[%c0_9, %c0_10] : memref<1x256xf32, #tpu.memory_space<vmem>>, vector<1x256xf32>
    %13 = vector.broadcast %12 : vector<1x256xf32> to vector<128x256xf32>
    %14 = arith.addf %11, %13 : vector<128x256xf32>
    %cst_11 = arith.constant 0.000000e+00 : f32
    %15 = vector.broadcast %cst_11 : f32 to vector<128x256xf32>
    %16 = arith.maximumf %14, %15 : vector<128x256xf32>
    %17 = arith.truncf %16 : vector<128x256xf32> to vector<128x256xbf16>
    %c0_12 = arith.constant 0 : index
    %c0_13 = arith.constant 0 : index
    %18 = vector.load %arg6[%c0_12, %c0_13] : memref<256x128xbf16, #tpu.memory_space<vmem>>, vector<256x128xbf16>
    %cst_14 = arith.constant dense<0.000000e+00> : vector<128x128xf32>
    %19 = tpu.matmul %17, %18, %cst_14 {dimension_numbers = #tpu.dot_dimension_numbers<[1], [0], [0], [1], [0, 0, 1, 1], [], []>} : vector<128x256xbf16>, vector<256x128xbf16>, vector<128x128xf32> -> vector<128x128xf32>
    %c0_15 = arith.constant 0 : index
    %c0_16 = arith.constant 0 : index
    %20 = vector.load %arg7[%c0_15, %c0_16] : memref<1x128xf32, #tpu.memory_space<vmem>>, vector<1x128xf32>
    %21 = vector.broadcast %20 : vector<1x128xf32> to vector<128x128xf32>
    %22 = arith.addf %19, %21 : vector<128x128xf32>
    %cst_17 = arith.constant 0.000000e+00 : f32
    %23 = vector.broadcast %cst_17 : f32 to vector<128x128xf32>
    %24 = arith.maximumf %22, %23 : vector<128x128xf32>
    %25 = arith.truncf %24 : vector<128x128xf32> to vector<128x128xbf16>
    %c0_18 = arith.constant 0 : index
    %c0_19 = arith.constant 0 : index
    %26 = vector.load %arg8[%c0_18, %c0_19] : memref<128x128xbf16, #tpu.memory_space<vmem>>, vector<128x128xbf16>
    %cst_20 = arith.constant dense<0.000000e+00> : vector<128x128xf32>
    %27 = tpu.matmul %25, %26, %cst_20 {dimension_numbers = #tpu.dot_dimension_numbers<[1], [0], [0], [1], [0, 0, 1, 1], [], []>} : vector<128x128xbf16>, vector<128x128xbf16>, vector<128x128xf32> -> vector<128x128xf32>
    %c0_21 = arith.constant 0 : index
    %c0_22 = arith.constant 0 : index
    %28 = vector.load %arg9[%c0_21, %c0_22] : memref<1x128xf32, #tpu.memory_space<vmem>>, vector<1x128xf32>
    %29 = vector.broadcast %28 : vector<1x128xf32> to vector<128x128xf32>
    %30 = arith.addf %27, %29 : vector<128x128xf32>
    %cst_23 = arith.constant 0.000000e+00 : f32
    %31 = vector.broadcast %cst_23 : f32 to vector<128x128xf32>
    %32 = arith.maximumf %30, %31 : vector<128x128xf32>
    %33 = tpu.transpose %32, [1, 0] : vector<128x128xf32> -> vector<128x128xf32>
    %c0_24 = arith.constant 0 : index
    %c0_25 = arith.constant 0 : index
    %34 = vector.load %arg10[%c0_24, %c0_25] : memref<128x1xf32, #tpu.memory_space<vmem>>, vector<128x1xf32>
    %35 = vector.broadcast %34 : vector<128x1xf32> to vector<128x128xf32>
    %36 = arith.mulf %33, %35 : vector<128x128xf32>
    %cst_26 = arith.constant dense<0.000000e+00> : vector<128xf32>
    %37 = vector.multi_reduction <add>, %36, %cst_26 [0] : vector<128x128xf32> to vector<128xf32>
    %38 = vector.shape_cast %37 : vector<128xf32> to vector<1x128xf32>
    %c0_27 = arith.constant 0 : index
    %c0_28 = arith.constant 0 : index
    %39 = vector.load %arg11[%c0_27, %c0_28] : memref<1x1xf32, #tpu.memory_space<vmem>>, vector<1x1xf32>
    %40 = vector.broadcast %39 : vector<1x1xf32> to vector<1x128xf32>
    %41 = arith.addf %38, %40 : vector<1x128xf32>
    %c0_29 = arith.constant 0 : index
    %c0_30 = arith.constant 0 : index
    %42 = vector.load %arg12[%c0_29, %c0_30] : memref<1x128xf32, #tpu.memory_space<vmem>>, vector<1x128xf32>
    tpu.vector_store %arg12[%c0_29, %c0_30], %41 {strides = array<i32>} : memref<1x128xf32, #tpu.memory_space<vmem>>, vector<1x128xf32>,
    return
  }
  func.func @transform_0(%arg0: i32) -> (i32, i32) {
    %c0_i32 = arith.constant 0 : i32
    %c0_i32_0 = arith.constant 0 : i32
    return %arg0, %c0_i32 : i32, i32
  }
  func.func @transform_1(%arg0: i32) -> (i32, i32) {
    %c0_i32 = arith.constant 0 : i32
    %c0_i32_0 = arith.constant 0 : i32
    %c0_i32_1 = arith.constant 0 : i32
    return %c0_i32, %c0_i32_0 : i32, i32
  }
  func.func @transform_2(%arg0: i32) -> (i32, i32) {
    %c0_i32 = arith.constant 0 : i32
    %c0_i32_0 = arith.constant 0 : i32
    %c0_i32_1 = arith.constant 0 : i32
    return %c0_i32, %c0_i32_0 : i32, i32
  }
  func.func @transform_3(%arg0: i32) -> (i32, i32) {
    %c0_i32 = arith.constant 0 : i32
    %c0_i32_0 = arith.constant 0 : i32
    %c0_i32_1 = arith.constant 0 : i32
    return %c0_i32, %c0_i32_0 : i32, i32
  }
  func.func @transform_4(%arg0: i32) -> (i32, i32) {
    %c0_i32 = arith.constant 0 : i32
    %c0_i32_0 = arith.constant 0 : i32
    %c0_i32_1 = arith.constant 0 : i32
    return %c0_i32, %c0_i32_0 : i32, i32
  }
  func.func @transform_5(%arg0: i32) -> (i32, i32) {
    %c0_i32 = arith.constant 0 : i32
    %c0_i32_0 = arith.constant 0 : i32
    %c0_i32_1 = arith.constant 0 : i32
    return %c0_i32, %c0_i32_0 : i32, i32
  }
  func.func @transform_6(%arg0: i32) -> (i32, i32) {
    %c0_i32 = arith.constant 0 : i32
    %c0_i32_0 = arith.constant 0 : i32
    %c0_i32_1 = arith.constant 0 : i32
    return %c0_i32, %c0_i32_0 : i32, i32
  }
  func.func @transform_7(%arg0: i32) -> (i32, i32) {
    %c0_i32 = arith.constant 0 : i32
    %c0_i32_0 = arith.constant 0 : i32
    %c0_i32_1 = arith.constant 0 : i32
    return %c0_i32, %c0_i32_0 : i32, i32
  }
  func.func @transform_8(%arg0: i32) -> (i32, i32) {
    %c0_i32 = arith.constant 0 : i32
    %c0_i32_0 = arith.constant 0 : i32
    %c0_i32_1 = arith.constant 0 : i32
    return %c0_i32, %c0_i32_0 : i32, i32
  }
  func.func @transform_9(%arg0: i32) -> (i32, i32) {
    %c0_i32 = arith.constant 0 : i32
    %c0_i32_0 = arith.constant 0 : i32
    %c0_i32_1 = arith.constant 0 : i32
    return %c0_i32, %c0_i32_0 : i32, i32
  }
  func.func @transform_10(%arg0: i32) -> (i32, i32) {
    %c0_i32 = arith.constant 0 : i32
    %c0_i32_0 = arith.constant 0 : i32
    %c0_i32_1 = arith.constant 0 : i32
    return %c0_i32, %c0_i32_0 : i32, i32
  }
  func.func @transform_11(%arg0: i32) -> (i32, i32) {
    %c0_i32 = arith.constant 0 : i32
    %c0_i32_0 = arith.constant 0 : i32
    return %c0_i32, %arg0 : i32, i32
  }
}

</mosaic_0001>

<llo_original>
// kernel: tpu_custom_call.1
$region0: #{tpu_custom_call.1}
  #allocation0 [shape = 'u32[]', space=smem, size = 0x4, offset = 0x4, fixed_abs, tag = 'smem constant byte address 0x4 - core index']
  #allocation1 [shape = 'u32[144,128]{1,0:T(1,128)}', space=vmem, size = 0x12000, scoped, tag = 'internal scratch']
  #allocation2 [shape = 'f32[1,1]{1,0:T(1,128)S(1)}', space=vmem, size = 0x200, scoped, tag = 'scoped memory for tpu_custom_call.1']
  %s0 = inlined_call_operand.vmem [shape: f32[128,32], index: 0, kind: input, shape index: {}]
  %s1 = inlined_call_operand.vmem [shape: bf16[32,256], index: 1, kind: input, shape index: {}]
  %s2 = inlined_call_operand.vmem [shape: f32[1,256], index: 2, kind: input, shape index: {}]
  %s3 = inlined_call_operand.vmem [shape: bf16[256,256], index: 3, kind: input, shape index: {}]
  %s4 = inlined_call_operand.vmem [shape: f32[1,256], index: 4, kind: input, shape index: {}]
  %s5 = inlined_call_operand.hbm [shape: bf16[256,128], index: 5, kind: input, shape index: {}]
  %s6 = inlined_call_operand.vmem [shape: f32[1,128], index: 6, kind: input, shape index: {}]
  %s7 = inlined_call_operand.hbm [shape: bf16[128,128], index: 7, kind: input, shape index: {}]
  %s8 = inlined_call_operand.vmem [shape: f32[1,128], index: 8, kind: input, shape index: {}]
  %s9 = inlined_call_operand.vmem [shape: f32[128,1], index: 9, kind: input, shape index: {}]
  %s10 = inlined_call_operand.<no memory space> [shape: f32[1,1], index: 10, kind: input, shape index: {}]
  %s11 = inlined_call_operand.hbm [shape: f32[1,128], index: 11, kind: output, shape index: {}]
  %s12 = sld [smem:[#allocation0]]
  $region62: #{tpu_custom_call.1} parent=0
    _
  %s14 = ssub.s32 1, %s12
  %s15 = scalar_select 0, %s14, %s12
  %v16 = vstv %s10
  %17 = vst [vmem:[#allocation2] sm:$0x1] %v16
  $region1: #{tpu_custom_call.1} parent=0
    #allocation3 [shape = 'u8[65536]{0}', space=vmem, size = 0x10000, scoped, tag = 'input window, operand 5, single buffered']
    #allocation4 [shape = 's32[1]{0}', space=sflag, size = 0x4, scoped, tag = 'scoped memory for tpu_custom_call.1']
    #allocation5 [shape = 's32[1]{0}', space=sflag, size = 0x4, scoped, tag = 'scoped memory for tpu_custom_call.1']
    #allocation6 [shape = 'u8[32768]{0}', space=vmem, size = 0x8000, scoped, tag = 'input window, operand 7, single buffered']
    #allocation7 [shape = 's32[1]{0}', space=sflag, size = 0x4, scoped, tag = 'scoped memory for tpu_custom_call.1']
    #allocation8 [shape = 'u8[512]{0}', space=vmem, size = 0x400, scoped, tag = 'output window, operand 0, single buffered']
    %18 = vsyncpa [#allocation4], 0
    %19 = vsyncpa [#allocation7], 0
    %20 = vsyncpa [#allocation5], 0
    // Predicated region
    $region2: #{tpu_custom_call.1} parent=1 // pred_check
      _
    $region3: #{tpu_custom_call.1} parent=1 // pred_check_branch
      %22 = sbr.rel (0) target = $region5
    $region4: #{tpu_custom_call.1} parent=1 // pred_region
      _
    $region5: #{tpu_custom_call.1} parent=1 // pred_fallthru
      _
    // Predicated region
    $region6: #{tpu_custom_call.1} parent=1 // pred_check
      _
    $region7: #{tpu_custom_call.1} parent=1 // pred_check_branch
      %24 = sbr.rel (0) target = $region9
    $region8: #{tpu_custom_call.1} parent=1 // pred_region
      _
    $region9: #{tpu_custom_call.1} parent=1 // pred_fallthru
      _
    // Predicated region
    $region10: #{tpu_custom_call.1} parent=1 // pred_check
      _
    $region11: #{tpu_custom_call.1} parent=1 // pred_check_branch
      %26 = sbr.rel (0) target = $region13
    $region12: #{tpu_custom_call.1} parent=1 // pred_region
      _
    $region13: #{tpu_custom_call.1} parent=1 // pred_fallthru
      _
    // Predicated region
    $region14: #{tpu_custom_call.1} parent=1 // pred_check
      _
    $region15: #{tpu_custom_call.1} parent=1 // pred_check_branch
      %28 = sbr.rel (0) target = $region17
    $region16: #{tpu_custom_call.1} parent=1 // pred_region
      _
    $region17: #{tpu_custom_call.1} parent=1 // pred_fallthru
      _
    // Predicated region
    $region18: #{tpu_custom_call.1} parent=1 // pred_check
      _
    $region19: #{tpu_custom_call.1} parent=1 // pred_check_branch
      %30 = sbr.rel (0) target = $region21
    $region20: #{tpu_custom_call.1} parent=1 // pred_region
      _
    $region21: #{tpu_custom_call.1} parent=1 // pred_fallthru
      _
    // Predicated region
    $region22: #{tpu_custom_call.1} parent=1 // pred_check
      _
    $region23: #{tpu_custom_call.1} parent=1 // pred_check_branch
      %32 = sbr.rel (0) target = $region25
    $region24: #{tpu_custom_call.1} parent=1 // pred_region
      %s34 = ssub.s32 2048, 2048
      %35 = vsyncadd [#allocation4], %s34
      %s36 = sshll.u32 [#allocation3], 4
      %s37 = int_to_ptr.vmem [resolvable:$true] %s36
      %42 = dma.hbm_to_vmem [thread:$0]  %s5, 2048, %s37, [#allocation4], 64, 64, 4
    $region25: #{tpu_custom_call.1} parent=1 // pred_fallthru
      _
    // Predicated region
    $region26: #{tpu_custom_call.1} parent=1 // pred_check
      _
    $region27: #{tpu_custom_call.1} parent=1 // pred_check_branch
      %44 = sbr.rel (0) target = $region29
    $region28: #{tpu_custom_call.1} parent=1 // pred_region
      _
    $region29: #{tpu_custom_call.1} parent=1 // pred_fallthru
      _
    // Predicated region
    $region30: #{tpu_custom_call.1} parent=1 // pred_check
      _
    $region31: #{tpu_custom_call.1} parent=1 // pred_check_branch
      %46 = sbr.rel (0) target = $region33
    $region32: #{tpu_custom_call.1} parent=1 // pred_region
      %s48 = ssub.s32 1024, 1024
      %49 = vsyncadd [#allocation7], %s48
      %s50 = sshll.u32 [#allocation6], 4
      %s51 = int_to_ptr.vmem [resolvable:$true] %s50
      %56 = dma.hbm_to_vmem [thread:$0]  %s7, 1024, %s51, [#allocation7], 64, 64, 4
    $region33: #{tpu_custom_call.1} parent=1 // pred_fallthru
      _
    // Predicated region
    $region34: #{tpu_custom_call.1} parent=1 // pred_check
      _
    $region35: #{tpu_custom_call.1} parent=1 // pred_check_branch
      %58 = sbr.rel (0) target = $region37
    $region36: #{tpu_custom_call.1} parent=1 // pred_region
      _
    $region37: #{tpu_custom_call.1} parent=1 // pred_fallthru
      _
    // Predicated region
    $region38: #{tpu_custom_call.1} parent=1 // pred_check
      _
    $region39: #{tpu_custom_call.1} parent=1 // pred_check_branch
      %60 = sbr.rel (0) target = $region41
    $region40: #{tpu_custom_call.1} parent=1 // pred_region
      _
    $region41: #{tpu_custom_call.1} parent=1 // pred_fallthru
      _
    // Predicated region
    $region42: #{tpu_custom_call.1} parent=1 // pred_check
      _
    $region43: #{tpu_custom_call.1} parent=1 // pred_check_branch
      %62 = sbr.rel (0) target = $region45
    $region44: #{tpu_custom_call.1} parent=1 // pred_region
      _
    $region45: #{tpu_custom_call.1} parent=1 // pred_fallthru
      _
    // Predicated region
    $region46: #{tpu_custom_call.1} parent=1 // pred_check
      _
    $region47: #{tpu_custom_call.1} parent=1 // pred_check_branch
      %64 = sbr.rel (0) target = $region49
    $region48: #{tpu_custom_call.1} parent=1 // pred_region
      %65 = dma.done [#allocation4], 2048
    $region49: #{tpu_custom_call.1} parent=1 // pred_fallthru
      _
    // Predicated region
    $region50: #{tpu_custom_call.1} parent=1 // pred_check
      _
    $region51: #{tpu_custom_call.1} parent=1 // pred_check_branch
      %67 = sbr.rel (0) target = $region53
    $region52: #{tpu_custom_call.1} parent=1 // pred_region
      %68 = dma.done [#allocation7], 1024
    $region53: #{tpu_custom_call.1} parent=1 // pred_fallthru
      _
    %v70 = vld [vmem:[%s0] sm:$0xff]
    %v71 = vld [vmem:[%s0 + $0x8] sm:$0xff]
    %v72 = vld [vmem:[%s0 + $0x10] sm:$0xff]
    %v73 = vld [vmem:[%s0 + $0x18] sm:$0xff]
    %v74 = vld [vmem:[%s0 + $0x20] sm:$0xff]
    %v75 = vld [vmem:[%s0 + $0x28] sm:$0xff]
    %v76 = vld [vmem:[%s0 + $0x30] sm:$0xff]
    %v77 = vld [vmem:[%s0 + $0x38] sm:$0xff]
    %v78 = vld [vmem:[%s0 + $0x40] sm:$0xff]
    %v79 = vld [vmem:[%s0 + $0x48] sm:$0xff]
    %v80 = vld [vmem:[%s0 + $0x50] sm:$0xff]
    %v81 = vld [vmem:[%s0 + $0x58] sm:$0xff]
    %v82 = vld [vmem:[%s0 + $0x60] sm:$0xff]
    %v83 = vld [vmem:[%s0 + $0x68] sm:$0xff]
    %v84 = vld [vmem:[%s0 + $0x70] sm:$0xff]
    %v85 = vld [vmem:[%s0 + $0x78] sm:$0xff]
    %v86 = vpack.c.bf16 %v71, %v70
    %v87 = vpack.c.bf16 %v73, %v72
    %v88 = vpack.c.bf16 %v75, %v74
    %v89 = vpack.c.bf16 %v77, %v76
    %v90 = vpack.c.bf16 %v79, %v78
    %v91 = vpack.c.bf16 %v81, %v80
    %v92 = vpack.c.bf16 %v83, %v82
    %v93 = vpack.c.bf16 %v85, %v84
    %v94 = vld [vmem:[%s1] sm:$0xff]
    %v95 = vld [vmem:[%s1 + $0x8] sm:$0xff]
    %v96 = vld [vmem:[%s1 + $0x10] sm:$0xff]
    %v97 = vld [vmem:[%s1 + $0x18] sm:$0xff]
    %v98 = vld [vmem:[%s2] sm:$0x3]
    %v100 = vlaneseq
    %v101 = vshrl.u32 %v100, 7
    %v102 = vsub.s32 0, %v101
    %v103 = vrot.slane %v98, %v102
    %v104 = vlaneseq
    %v105 = vshrl.u32 %v104, 7
    %v106 = vsub.s32 1, %v105
    %v107 = vrot.slane %v98, %v106
    %v114 = vunpack.c.l.b16 %v94
    %v115 = vunpack.c.h.b16 %v94
    %v116 = vunpack.c.l.b16 %v95
    %v117 = vunpack.c.h.b16 %v95
    %v118 = vunpack.c.l.b16 %v96
    %v119 = vunpack.c.h.b16 %v96
    %v120 = vunpack.c.l.b16 %v97
    %v121 = vunpack.c.h.b16 %v97
    %v122 = vpack.c.b16 %v116, %v114
    %v123 = vpack.c.b16 %v117, %v115
    %v124 = vpack.c.b16 %v120, %v118
    %v125 = vpack.c.b16 %v121, %v119
    %vm130 = vcmask 261120
    %v132 = vsel %vm130, %v86, 0
    %v135 = vsel %vm130, %v87, 0
    %v138 = vsel %vm130, %v88, 0
    %v141 = vsel %vm130, %v89, 0
    %v144 = vsel %vm130, %v90, 0
    %v147 = vsel %vm130, %v91, 0
    %v150 = vsel %vm130, %v92, 0
    %v153 = vsel %vm130, %v93, 0
    %155 = vmatprep.subr.bf16.mxu0 %v123
    %156 = vmatpush1.bf16.msra.mxu0 %v122
    %157 = vmatprep.subr.bf16.mxu0 %v125
    %158 = vmatpush1.bf16.msra.mxu0 %v124
    %159 = vmatprep.subr.bf16.mxu0 0
    %160 = vmatpush1.bf16.msra.mxu0 0
    %161 = vmatprep.subr.bf16.mxu0 0
    %162 = vmatpush1.bf16.msra.mxu0 0
    %163 = vmatprep.subr.bf16.mxu0 0
    %164 = vmatpush1.bf16.msra.mxu0 0
    %165 = vmatprep.subr.bf16.mxu0 0
    %166 = vmatpush1.bf16.msra.mxu0 0
    %167 = vmatprep.subr.bf16.mxu0 0
    %168 = vmatpush1.bf16.msra.mxu0 0
    %169 = vmatprep.subr.bf16.mxu0 0
    %170 = vmatpush1.bf16.msra.mxu0 0
    %171 = vmatprep.subr.bf16.mxu0 0
    %172 = vmatpush1.bf16.msra.mxu0 0
    %173 = vmatprep.subr.bf16.mxu0 0
    %174 = vmatpush1.bf16.msra.mxu0 0
    %175 = vmatprep.subr.bf16.mxu0 0
    %176 = vmatpush1.bf16.msra.mxu0 0
    %177 = vmatprep.subr.bf16.mxu0 0
    %178 = vmatpush1.bf16.msra.mxu0 0
    %179 = vmatprep.subr.bf16.mxu0 0
    %180 = vmatpush1.bf16.msra.mxu0 0
    %181 = vmatprep.subr.bf16.mxu0 0
    %182 = vmatpush1.bf16.msra.mxu0 0
    %183 = vmatprep.subr.bf16.mxu0 0
    %184 = vmatpush1.bf16.msra.mxu0 0
    %185 = vmatprep.subr.bf16.mxu0 0
    %186 = vmatpush1.bf16.msra.mxu0 0
    %187 = vmatprep.mubr.bf16.mxu0 0
    %188 = vmatmul.mubr.bf16.gmra.mrb[0].mxu0 %v132
    %v189 = vpop.f32.mrb[0].mxu0
    %v190 = vadd.f32 %v103, %v189
    %v191 = vpop.f32.mrb[0].mxu0
    %v192 = vadd.f32 %v107, %v191
    %v193 = vpop.f32.mrb[0].mxu0
    %v194 = vadd.f32 %v103, %v193
    %v195 = vpop.f32.mrb[0].mxu0
    %v196 = vadd.f32 %v107, %v195
    %197 = vmatprep.mubr.bf16.mxu0 0
    %198 = vmatmul.mubr.bf16.gmra.mrb[0].mxu0 %v135
    %v199 = vpop.f32.mrb[0].mxu0
    %v200 = vadd.f32 %v103, %v199
    %v201 = vpop.f32.mrb[0].mxu0
    %v202 = vadd.f32 %v107, %v201
    %v203 = vpop.f32.mrb[0].mxu0
    %v204 = vadd.f32 %v103, %v203
    %v205 = vpop.f32.mrb[0].mxu0
    %v206 = vadd.f32 %v107, %v205
    %207 = vmatprep.mubr.bf16.mxu0 0
    %208 = vmatmul.mubr.bf16.gmra.mrb[0].mxu0 %v138
    %v209 = vpop.f32.mrb[0].mxu0
    %v210 = vadd.f32 %v103, %v209
    %v211 = vpop.f32.mrb[0].mxu0
    %v212 = vadd.f32 %v107, %v211
    %v213 = vpop.f32.mrb[0].mxu0
    %v214 = vadd.f32 %v103, %v213
    %v215 = vpop.f32.mrb[0].mxu0
    %v216 = vadd.f32 %v107, %v215
    %217 = vmatprep.mubr.bf16.mxu0 0
    %218 = vmatmul.mubr.bf16.gmra.mrb[0].mxu0 %v141
    %v219 = vpop.f32.mrb[0].mxu0
    %v220 = vadd.f32 %v103, %v219
    %v221 = vpop.f32.mrb[0].mxu0
    %v222 = vadd.f32 %v107, %v221
    %v223 = vpop.f32.mrb[0].mxu0
    %v224 = vadd.f32 %v103, %v223
    %v225 = vpop.f32.mrb[0].mxu0
    %v226 = vadd.f32 %v107, %v225
    %227 = vmatprep.mubr.bf16.mxu0 0
    %228 = vmatmul.mubr.bf16.gmra.mrb[0].mxu0 %v144
    %v229 = vpop.f32.mrb[0].mxu0
    %v230 = vadd.f32 %v103, %v229
    %v231 = vpop.f32.mrb[0].mxu0
    %v232 = vadd.f32 %v107, %v231
    %v233 = vpop.f32.mrb[0].mxu0
    %v234 = vadd.f32 %v103, %v233
    %v235 = vpop.f32.mrb[0].mxu0
    %v236 = vadd.f32 %v107, %v235
    %237 = vmatprep.mubr.bf16.mxu0 0
    %238 = vmatmul.mubr.bf16.gmra.mrb[0].mxu0 %v147
    %v239 = vpop.f32.mrb[0].mxu0
    %v240 = vadd.f32 %v103, %v239
    %v241 = vpop.f32.mrb[0].mxu0
    %v242 = vadd.f32 %v107, %v241
    %v243 = vpop.f32.mrb[0].mxu0
    %v244 = vadd.f32 %v103, %v243
    %v245 = vpop.f32.mrb[0].mxu0
    %v246 = vadd.f32 %v107, %v245
    %247 = vmatprep.mubr.bf16.mxu0 0
    %248 = vmatmul.mubr.bf16.gmra.mrb[0].mxu0 %v150
    %v249 = vpop.f32.mrb[0].mxu0
    %v250 = vadd.f32 %v103, %v249
    %v251 = vpop.f32.mrb[0].mxu0
    %v252 = vadd.f32 %v107, %v251
    %v253 = vpop.f32.mrb[0].mxu0
    %v254 = vadd.f32 %v103, %v253
    %v255 = vpop.f32.mrb[0].mxu0
    %v256 = vadd.f32 %v107, %v255
    %257 = vmatprep.mubr.bf16.mxu0 0
    %258 = vmatmul.mubr.bf16.gmra.mrb[0].mxu0 %v153
    %v259 = vpop.f32.mrb[0].mxu0
    %v260 = vadd.f32 %v103, %v259
    %v261 = vpop.f32.mrb[0].mxu0
    %v262 = vadd.f32 %v107, %v261
    %v263 = vpop.f32.mrb[0].mxu0
    %v264 = vadd.f32 %v103, %v263
    %v265 = vpop.f32.mrb[0].mxu0
    %v266 = vadd.f32 %v107, %v265
    %267 = vdwg.mxu0
    %v268 = vmax.f32 %v190, 0.0
    %v269 = vmax.f32 %v192, 0.0
    %v270 = vmax.f32 %v194, 0.0
    %v271 = vmax.f32 %v196, 0.0
    %v272 = vmax.f32 %v200, 0.0
    %v273 = vmax.f32 %v202, 0.0
    %v274 = vmax.f32 %v204, 0.0
    %v275 = vmax.f32 %v206, 0.0
    %v276 = vmax.f32 %v210, 0.0
    %v277 = vmax.f32 %v212, 0.0
    %v278 = vmax.f32 %v214, 0.0
    %v279 = vmax.f32 %v216, 0.0
    %v280 = vmax.f32 %v220, 0.0
    %v281 = vmax.f32 %v222, 0.0
    %v282 = vmax.f32 %v224, 0.0
    %v283 = vmax.f32 %v226, 0.0
    %v284 = vmax.f32 %v230, 0.0
    %v285 = vmax.f32 %v232, 0.0
    %v286 = vmax.f32 %v234, 0.0
    %v287 = vmax.f32 %v236, 0.0
    %v288 = vmax.f32 %v240, 0.0
    %v289 = vmax.f32 %v242, 0.0
    %v290 = vmax.f32 %v244, 0.0
    %v291 = vmax.f32 %v246, 0.0
    %v292 = vmax.f32 %v250, 0.0
    %v293 = vmax.f32 %v252, 0.0
    %v294 = vmax.f32 %v254, 0.0
    %v295 = vmax.f32 %v256, 0.0
    %v296 = vmax.f32 %v260, 0.0
    %v297 = vmax.f32 %v262, 0.0
    %v298 = vmax.f32 %v264, 0.0
    %v299 = vmax.f32 %v266, 0.0
    %v300 = vpack.c.bf16 %v270, %v268
    %v301 = vpack.c.bf16 %v271, %v269
    %v302 = vpack.c.bf16 %v274, %v272
    %v303 = vpack.c.bf16 %v275, %v273
    %v304 = vpack.c.bf16 %v278, %v276
    %v305 = vpack.c.bf16 %v279, %v277
    %v306 = vpack.c.bf16 %v282, %v280
    %v307 = vpack.c.bf16 %v283, %v281
    %v308 = vpack.c.bf16 %v286, %v284
    %v309 = vpack.c.bf16 %v287, %v285
    %v310 = vpack.c.bf16 %v290, %v288
    %v311 = vpack.c.bf16 %v291, %v289
    %v312 = vpack.c.bf16 %v294, %v292
    %v313 = vpack.c.bf16 %v295, %v293
    %v314 = vpack.c.bf16 %v298, %v296
    %v315 = vpack.c.bf16 %v299, %v297
    %v316 = vld [vmem:[%s3] sm:$0xff]
    %v317 = vld [vmem:[%s3 + $0x8] sm:$0xff]
    %v318 = vld [vmem:[%s3 + $0x10] sm:$0xff]
    %v319 = vld [vmem:[%s3 + $0x18] sm:$0xff]
    %v320 = vld [vmem:[%s3 + $0x20] sm:$0xff]
    %v321 = vld [vmem:[%s3 + $0x28] sm:$0xff]
    %v322 = vld [vmem:[%s3 + $0x30] sm:$0xff]
    %v323 = vld [vmem:[%s3 + $0x38] sm:$0xff]
    %v324 = vld [vmem:[%s3 + $0x40] sm:$0xff]
    %v325 = vld [vmem:[%s3 + $0x48] sm:$0xff]
    %v326 = vld [vmem:[%s3 + $0x50] sm:$0xff]
    %v327 = vld [vmem:[%s3 + $0x58] sm:$0xff]
    %v328 = vld [vmem:[%s3 + $0x60] sm:$0xff]
    %v329 = vld [vmem:[%s3 + $0x68] sm:$0xff]
    %v330 = vld [vmem:[%s3 + $0x70] sm:$0xff]
    %v331 = vld [vmem:[%s3 + $0x78] sm:$0xff]
    %v332 = vld [vmem:[%s3 + $0x80] sm:$0xff]
    %v333 = vld [vmem:[%s3 + $0x88] sm:$0xff]
    %v334 = vld [vmem:[%s3 + $0x90] sm:$0xff]
    %v335 = vld [vmem:[%s3 + $0x98] sm:$0xff]
    %v336 = vld [vmem:[%s3 + $0xa0] sm:$0xff]
    %v337 = vld [vmem:[%s3 + $0xa8] sm:$0xff]
    %v338 = vld [vmem:[%s3 + $0xb0] sm:$0xff]
    %v339 = vld [vmem:[%s3 + $0xb8] sm:$0xff]
    %v340 = vld [vmem:[%s3 + $0xc0] sm:$0xff]
    %v341 = vld [vmem:[%s3 + $0xc8] sm:$0xff]
    %v342 = vld [vmem:[%s3 + $0xd0] sm:$0xff]
    %v343 = vld [vmem:[%s3 + $0xd8] sm:$0xff]
    %v344 = vld [vmem:[%s3 + $0xe0] sm:$0xff]
    %v345 = vld [vmem:[%s3 + $0xe8] sm:$0xff]
    %v346 = vld [vmem:[%s3 + $0xf0] sm:$0xff]
    %v347 = vld [vmem:[%s3 + $0xf8] sm:$0xff]
    %v348 = vld [vmem:[%s4] sm:$0x3]
    %v350 = vlaneseq
    %v351 = vshrl.u32 %v350, 7
    %v352 = vsub.s32 0, %v351
    %v353 = vrot.slane %v348, %v352
    %v354 = vlaneseq
    %v355 = vshrl.u32 %v354, 7
    %v356 = vsub.s32 1, %v355
    %v357 = vrot.slane %v348, %v356
    %v392 = vunpack.c.l.b16 %v316
    %v393 = vunpack.c.h.b16 %v316
    %v394 = vunpack.c.l.b16 %v317
    %v395 = vunpack.c.h.b16 %v317
    %v396 = vunpack.c.l.b16 %v318
    %v397 = vunpack.c.h.b16 %v318
    %v398 = vunpack.c.l.b16 %v319
    %v399 = vunpack.c.h.b16 %v319
    %v400 = vunpack.c.l.b16 %v320
    %v401 = vunpack.c.h.b16 %v320
    %v402 = vunpack.c.l.b16 %v321
    %v403 = vunpack.c.h.b16 %v321
    %v404 = vunpack.c.l.b16 %v322
    %v405 = vunpack.c.h.b16 %v322
    %v406 = vunpack.c.l.b16 %v323
    %v407 = vunpack.c.h.b16 %v323
    %v408 = vunpack.c.l.b16 %v324
    %v409 = vunpack.c.h.b16 %v324
    %v410 = vunpack.c.l.b16 %v325
    %v411 = vunpack.c.h.b16 %v325
    %v412 = vunpack.c.l.b16 %v326
    %v413 = vunpack.c.h.b16 %v326
    %v414 = vunpack.c.l.b16 %v327
    %v415 = vunpack.c.h.b16 %v327
    %v416 = vunpack.c.l.b16 %v328
    %v417 = vunpack.c.h.b16 %v328
    %v418 = vunpack.c.l.b16 %v329
    %v419 = vunpack.c.h.b16 %v329
    %v420 = vunpack.c.l.b16 %v330
    %v421 = vunpack.c.h.b16 %v330
    %v422 = vunpack.c.l.b16 %v331
    %v423 = vunpack.c.h.b16 %v331
    %v424 = vunpack.c.l.b16 %v332
    %v425 = vunpack.c.h.b16 %v332
    %v426 = vunpack.c.l.b16 %v333
    %v427 = vunpack.c.h.b16 %v333
    %v428 = vunpack.c.l.b16 %v334
    %v429 = vunpack.c.h.b16 %v334
    %v430 = vunpack.c.l.b16 %v335
    %v431 = vunpack.c.h.b16 %v335
    %v432 = vunpack.c.l.b16 %v336
    %v433 = vunpack.c.h.b16 %v336
    %v434 = vunpack.c.l.b16 %v337
    %v435 = vunpack.c.h.b16 %v337
    %v436 = vunpack.c.l.b16 %v338
    %v437 = vunpack.c.h.b16 %v338
    %v438 = vunpack.c.l.b16 %v339
    %v439 = vunpack.c.h.b16 %v339
    %v440 = vunpack.c.l.b16 %v340
    %v441 = vunpack.c.h.b16 %v340
    %v442 = vunpack.c.l.b16 %v341
    %v443 = vunpack.c.h.b16 %v341
    %v444 = vunpack.c.l.b16 %v342
    %v445 = vunpack.c.h.b16 %v342
    %v446 = vunpack.c.l.b16 %v343
    %v447 = vunpack.c.h.b16 %v343
    %v448 = vunpack.c.l.b16 %v344
    %v449 = vunpack.c.h.b16 %v344
    %v450 = vunpack.c.l.b16 %v345
    %v451 = vunpack.c.h.b16 %v345
    %v452 = vunpack.c.l.b16 %v346
    %v453 = vunpack.c.h.b16 %v346
    %v454 = vunpack.c.l.b16 %v347
    %v455 = vunpack.c.h.b16 %v347
    %v456 = vpack.c.b16 %v394, %v392
    %v457 = vpack.c.b16 %v395, %v393
    %v458 = vpack.c.b16 %v398, %v396
    %v459 = vpack.c.b16 %v399, %v397
    %v460 = vpack.c.b16 %v402, %v400
    %v461 = vpack.c.b16 %v403, %v401
    %v462 = vpack.c.b16 %v406, %v404
    %v463 = vpack.c.b16 %v407, %v405
    %v464 = vpack.c.b16 %v410, %v408
    %v465 = vpack.c.b16 %v411, %v409
    %v466 = vpack.c.b16 %v414, %v412
    %v467 = vpack.c.b16 %v415, %v413
    %v468 = vpack.c.b16 %v418, %v416
    %v469 = vpack.c.b16 %v419, %v417
    %v470 = vpack.c.b16 %v422, %v420
    %v471 = vpack.c.b16 %v423, %v421
    %v472 = vpack.c.b16 %v426, %v424
    %v473 = vpack.c.b16 %v427, %v425
    %v474 = vpack.c.b16 %v430, %v428
    %v475 = vpack.c.b16 %v431, %v429
    %v476 = vpack.c.b16 %v434, %v432
    %v477 = vpack.c.b16 %v435, %v433
    %v478 = vpack.c.b16 %v438, %v436
    %v479 = vpack.c.b16 %v439, %v437
    %v480 = vpack.c.b16 %v442, %v440
    %v481 = vpack.c.b16 %v443, %v441
    %v482 = vpack.c.b16 %v446, %v444
    %v483 = vpack.c.b16 %v447, %v445
    %v484 = vpack.c.b16 %v450, %v448
    %v485 = vpack.c.b16 %v451, %v449
    %v486 = vpack.c.b16 %v454, %v452
    %v487 = vpack.c.b16 %v455, %v453
    %520 = vmatprep.subr.bf16.mxu0 %v457
    %521 = vmatpush1.bf16.msra.mxu0 %v456
    %522 = vmatprep.subr.bf16.mxu0 %v459
    %523 = vmatpush1.bf16.msra.mxu0 %v458
    %524 = vmatprep.subr.bf16.mxu0 %v461
    %525 = vmatpush1.bf16.msra.mxu0 %v460
    %526 = vmatprep.subr.bf16.mxu0 %v463
    %527 = vmatpush1.bf16.msra.mxu0 %v462
    %528 = vmatprep.subr.bf16.mxu0 %v465
    %529 = vmatpush1.bf16.msra.mxu0 %v464
    %530 = vmatprep.subr.bf16.mxu0 %v467
    %531 = vmatpush1.bf16.msra.mxu0 %v466
    %532 = vmatprep.subr.bf16.mxu0 %v469
    %533 = vmatpush1.bf16.msra.mxu0 %v468
    %534 = vmatprep.subr.bf16.mxu0 %v471
    %535 = vmatpush1.bf16.msra.mxu0 %v470
    %536 = vmatprep.subr.bf16.mxu0 %v473
    %537 = vmatpush1.bf16.msra.mxu0 %v472
    %538 = vmatprep.subr.bf16.mxu0 %v475
    %539 = vmatpush1.bf16.msra.mxu0 %v474
    %540 = vmatprep.subr.bf16.mxu0 %v477
    %541 = vmatpush1.bf16.msra.mxu0 %v476
    %542 = vmatprep.subr.bf16.mxu0 %v479
    %543 = vmatpush1.bf16.msra.mxu0 %v478
    %544 = vmatprep.subr.bf16.mxu0 %v481
    %545 = vmatpush1.bf16.msra.mxu0 %v480
    %546 = vmatprep.subr.bf16.mxu0 %v483
    %547 = vmatpush1.bf16.msra.mxu0 %v482
    %548 = vmatprep.subr.bf16.mxu0 %v485
    %549 = vmatpush1.bf16.msra.mxu0 %v484
    %550 = vmatprep.subr.bf16.mxu0 %v487
    %551 = vmatpush1.bf16.msra.mxu0 %v486
    %552 = vmatprep.mubr.bf16.mxu0 %v301
    %553 = vmatmul.mubr.bf16.gmra.mrb[0].mxu0 %v300
    %v554 = vpop.f32.mrb[0].mxu0
    %v555 = vadd.f32 %v353, %v554
    %v556 = vpop.f32.mrb[0].mxu0
    %v557 = vadd.f32 %v357, %v556
    %v558 = vpop.f32.mrb[0].mxu0
    %v559 = vadd.f32 %v353, %v558
    %v560 = vpop.f32.mrb[0].mxu0
    %v561 = vadd.f32 %v357, %v560
    %562 = vmatprep.mubr.bf16.mxu0 %v303
    %563 = vmatmul.mubr.bf16.gmra.mrb[0].mxu0 %v302
    %v564 = vpop.f32.mrb[0].mxu0
    %v565 = vadd.f32 %v353, %v564
    %v566 = vpop.f32.mrb[0].mxu0
    %v567 = vadd.f32 %v357, %v566
    %v568 = vpop.f32.mrb[0].mxu0
    %v569 = vadd.f32 %v353, %v568
    %v570 = vpop.f32.mrb[0].mxu0
    %v571 = vadd.f32 %v357, %v570
    %572 = vmatprep.mubr.bf16.mxu0 %v305
    %573 = vmatmul.mubr.bf16.gmra.mrb[0].mxu0 %v304
    %v574 = vpop.f32.mrb[0].mxu0
    %v575 = vadd.f32 %v353, %v574
    %v576 = vpop.f32.mrb[0].mxu0
    %v577 = vadd.f32 %v357, %v576
    %v578 = vpop.f32.mrb[0].mxu0
    %v579 = vadd.f32 %v353, %v578
    %v580 = vpop.f32.mrb[0].mxu0
    %v581 = vadd.f32 %v357, %v580
    %582 = vmatprep.mubr.bf16.mxu0 %v307
    %583 = vmatmul.mubr.bf16.gmra.mrb[0].mxu0 %v306
    %v584 = vpop.f32.mrb[0].mxu0
    %v585 = vadd.f32 %v353, %v584
    %v586 = vpop.f32.mrb[0].mxu0
    %v587 = vadd.f32 %v357, %v586
    %v588 = vpop.f32.mrb[0].mxu0
    %v589 = vadd.f32 %v353, %v588
    %v590 = vpop.f32.mrb[0].mxu0
    %v591 = vadd.f32 %v357, %v590
    %592 = vmatprep.mubr.bf16.mxu0 %v309
    %593 = vmatmul.mubr.bf16.gmra.mrb[0].mxu0 %v308
    %v594 = vpop.f32.mrb[0].mxu0
    %v595 = vadd.f32 %v353, %v594
    %v596 = vpop.f32.mrb[0].mxu0
    %v597 = vadd.f32 %v357, %v596
    %v598 = vpop.f32.mrb[0].mxu0
    %v599 = vadd.f32 %v353, %v598
    %v600 = vpop.f32.mrb[0].mxu0
    %v601 = vadd.f32 %v357, %v600
    %602 = vmatprep.mubr.bf16.mxu0 %v311
    %603 = vmatmul.mubr.bf16.gmra.mrb[0].mxu0 %v310
    %v604 = vpop.f32.mrb[0].mxu0
    %v605 = vadd.f32 %v353, %v604
    %v606 = vpop.f32.mrb[0].mxu0
    %v607 = vadd.f32 %v357, %v606
    %v608 = vpop.f32.mrb[0].mxu0
    %v609 = vadd.f32 %v353, %v608
    %v610 = vpop.f32.mrb[0].mxu0
    %v611 = vadd.f32 %v357, %v610
    %612 = vmatprep.mubr.bf16.mxu0 %v313
    %613 = vmatmul.mubr.bf16.gmra.mrb[0].mxu0 %v312
    %v614 = vpop.f32.mrb[0].mxu0
    %v615 = vadd.f32 %v353, %v614
    %v616 = vpop.f32.mrb[0].mxu0
    %v617 = vadd.f32 %v357, %v616
    %v618 = vpop.f32.mrb[0].mxu0
    %v619 = vadd.f32 %v353, %v618
    %v620 = vpop.f32.mrb[0].mxu0
    %v621 = vadd.f32 %v357, %v620
    %622 = vmatprep.mubr.bf16.mxu0 %v315
    %623 = vmatmul.mubr.bf16.gmra.mrb[0].mxu0 %v314
    %v624 = vpop.f32.mrb[0].mxu0
    %v625 = vadd.f32 %v353, %v624
    %v626 = vpop.f32.mrb[0].mxu0
    %v627 = vadd.f32 %v357, %v626
    %v628 = vpop.f32.mrb[0].mxu0
    %v629 = vadd.f32 %v353, %v628
    %v630 = vpop.f32.mrb[0].mxu0
    %v631 = vadd.f32 %v357, %v630
    %632 = vdwg.mxu0
    %v633 = vmax.f32 %v555, 0.0
    %v634 = vmax.f32 %v557, 0.0
    %v635 = vmax.f32 %v559, 0.0
    %v636 = vmax.f32 %v561, 0.0
    %v637 = vmax.f32 %v565, 0.0
    %v638 = vmax.f32 %v567, 0.0
    %v639 = vmax.f32 %v569, 0.0
    %v640 = vmax.f32 %v571, 0.0
    %v641 = vmax.f32 %v575, 0.0
    %v642 = vmax.f32 %v577, 0.0
    %v643 = vmax.f32 %v579, 0.0
    %v644 = vmax.f32 %v581, 0.0
    %v645 = vmax.f32 %v585, 0.0
    %v646 = vmax.f32 %v587, 0.0
    %v647 = vmax.f32 %v589, 0.0
    %v648 = vmax.f32 %v591, 0.0
    %v649 = vmax.f32 %v595, 0.0
    %v650 = vmax.f32 %v597, 0.0
    %v651 = vmax.f32 %v599, 0.0
    %v652 = vmax.f32 %v601, 0.0
    %v653 = vmax.f32 %v605, 0.0
    %v654 = vmax.f32 %v607, 0.0
    %v655 = vmax.f32 %v609, 0.0
    %v656 = vmax.f32 %v611, 0.0
    %v657 = vmax.f32 %v615, 0.0
    %v658 = vmax.f32 %v617, 0.0
    %v659 = vmax.f32 %v619, 0.0
    %v660 = vmax.f32 %v621, 0.0
    %v661 = vmax.f32 %v625, 0.0
    %v662 = vmax.f32 %v627, 0.0
    %v663 = vmax.f32 %v629, 0.0
    %v664 = vmax.f32 %v631, 0.0
    %v665 = vpack.c.bf16 %v635, %v633
    %v666 = vpack.c.bf16 %v636, %v634
    %v667 = vpack.c.bf16 %v639, %v637
    %v668 = vpack.c.bf16 %v640, %v638
    %v669 = vpack.c.bf16 %v643, %v641
    %v670 = vpack.c.bf16 %v644, %v642
    %v671 = vpack.c.bf16 %v647, %v645
    %v672 = vpack.c.bf16 %v648, %v646
    %v673 = vpack.c.bf16 %v651, %v649
    %v674 = vpack.c.bf16 %v652, %v650
    %v675 = vpack.c.bf16 %v655, %v653
    %v676 = vpack.c.bf16 %v656, %v654
    %v677 = vpack.c.bf16 %v659, %v657
    %v678 = vpack.c.bf16 %v660, %v658
    %v679 = vpack.c.bf16 %v663, %v661
    %v680 = vpack.c.bf16 %v664, %v662
    %v681 = vld [vmem:[#allocation3] sm:$0xf]
    %v682 = vld [vmem:[#allocation3 + $0x4] sm:$0xf]
    %v683 = vld [vmem:[#allocation3 + $0x8] sm:$0xf]
    %v684 = vld [vmem:[#allocation3 + $0xc] sm:$0xf]
    %v685 = vld [vmem:[#allocation3 + $0x10] sm:$0xf]
    %v686 = vld [vmem:[#allocation3 + $0x14] sm:$0xf]
    %v687 = vld [vmem:[#allocation3 + $0x18] sm:$0xf]
    %v688 = vld [vmem:[#allocation3 + $0x1c] sm:$0xf]
    %v689 = vld [vmem:[#allocation3 + $0x20] sm:$0xf]
    %v690 = vld [vmem:[#allocation3 + $0x24] sm:$0xf]
    %v691 = vld [vmem:[#allocation3 + $0x28] sm:$0xf]
    %v692 = vld [vmem:[#allocation3 + $0x2c] sm:$0xf]
    %v693 = vld [vmem:[#allocation3 + $0x30] sm:$0xf]
    %v694 = vld [vmem:[#allocation3 + $0x34] sm:$0xf]
    %v695 = vld [vmem:[#allocation3 + $0x38] sm:$0xf]
    %v696 = vld [vmem:[#allocation3 + $0x3c] sm:$0xf]
    %v697 = vld [vmem:[#allocation3 + $0x40] sm:$0xf]
    %v698 = vld [vmem:[#allocation3 + $0x44] sm:$0xf]
    %v699 = vld [vmem:[#allocation3 + $0x48] sm:$0xf]
    %v700 = vld [vmem:[#allocation3 + $0x4c] sm:$0xf]
    %v701 = vld [vmem:[#allocation3 + $0x50] sm:$0xf]
    %v702 = vld [vmem:[#allocation3 + $0x54] sm:$0xf]
    %v703 = vld [vmem:[#allocation3 + $0x58] sm:$0xf]
    %v704 = vld [vmem:[#allocation3 + $0x5c] sm:$0xf]
    %v705 = vld [vmem:[#allocation3 + $0x60] sm:$0xf]
    %v706 = vld [vmem:[#allocation3 + $0x64] sm:$0xf]
    %v707 = vld [vmem:[#allocation3 + $0x68] sm:$0xf]
    %v708 = vld [vmem:[#allocation3 + $0x6c] sm:$0xf]
    %v709 = vld [vmem:[#allocation3 + $0x70] sm:$0xf]
    %v710 = vld [vmem:[#allocation3 + $0x74] sm:$0xf]
    %v711 = vld [vmem:[#allocation3 + $0x78] sm:$0xf]
    %v712 = vld [vmem:[#allocation3 + $0x7c] sm:$0xf]
    %v713 = vld [vmem:[%s6] sm:$0x1]
    %v715 = vlaneseq
    %v716 = vshrl.u32 %v715, 7
    %v717 = vsub.s32 0, %v716
    %v718 = vrot.slane %v713, %v717
    %v752 = vunpack.c.l.b16 %v681
    %v753 = vunpack.c.l.b16 %v682
    %v754 = vunpack.c.l.b16 %v683
    %v755 = vunpack.c.l.b16 %v684
    %v756 = vunpack.c.l.b16 %v685
    %v757 = vunpack.c.l.b16 %v686
    %v758 = vunpack.c.l.b16 %v687
    %v759 = vunpack.c.l.b16 %v688
    %v760 = vunpack.c.l.b16 %v689
    %v761 = vunpack.c.l.b16 %v690
    %v762 = vunpack.c.l.b16 %v691
    %v763 = vunpack.c.l.b16 %v692
    %v764 = vunpack.c.l.b16 %v693
    %v765 = vunpack.c.l.b16 %v694
    %v766 = vunpack.c.l.b16 %v695
    %v767 = vunpack.c.l.b16 %v696
    %v768 = vunpack.c.l.b16 %v697
    %v769 = vunpack.c.l.b16 %v698
    %v770 = vunpack.c.l.b16 %v699
    %v771 = vunpack.c.l.b16 %v700
    %v772 = vunpack.c.l.b16 %v701
    %v773 = vunpack.c.l.b16 %v702
    %v774 = vunpack.c.l.b16 %v703
    %v775 = vunpack.c.l.b16 %v704
    %v776 = vunpack.c.l.b16 %v705
    %v777 = vunpack.c.l.b16 %v706
    %v778 = vunpack.c.l.b16 %v707
    %v779 = vunpack.c.l.b16 %v708
    %v780 = vunpack.c.l.b16 %v709
    %v781 = vunpack.c.l.b16 %v710
    %v782 = vunpack.c.l.b16 %v711
    %v783 = vunpack.c.l.b16 %v712
    %v784 = vpack.c.b16 %v753, %v752
    %v785 = vpack.c.b16 %v755, %v754
    %v786 = vpack.c.b16 %v757, %v756
    %v787 = vpack.c.b16 %v759, %v758
    %v788 = vpack.c.b16 %v761, %v760
    %v789 = vpack.c.b16 %v763, %v762
    %v790 = vpack.c.b16 %v765, %v764
    %v791 = vpack.c.b16 %v767, %v766
    %v792 = vpack.c.b16 %v769, %v768
    %v793 = vpack.c.b16 %v771, %v770
    %v794 = vpack.c.b16 %v773, %v772
    %v795 = vpack.c.b16 %v775, %v774
    %v796 = vpack.c.b16 %v777, %v776
    %v797 = vpack.c.b16 %v779, %v778
    %v798 = vpack.c.b16 %v781, %v780
    %v799 = vpack.c.b16 %v783, %v782
    %816 = vmatprep.subr.bf16.mxu0 0
    %817 = vmatpush1.bf16.msra.mxu0 %v784
    %818 = vmatprep.subr.bf16.mxu0 0
    %819 = vmatpush1.bf16.msra.mxu0 %v785
    %820 = vmatprep.subr.bf16.mxu0 0
    %821 = vmatpush1.bf16.msra.mxu0 %v786
    %822 = vmatprep.subr.bf16.mxu0 0
    %823 = vmatpush1.bf16.msra.mxu0 %v787
    %824 = vmatprep.subr.bf16.mxu0 0
    %825 = vmatpush1.bf16.msra.mxu0 %v788
    %826 = vmatprep.subr.bf16.mxu0 0
    %827 = vmatpush1.bf16.msra.mxu0 %v789
    %828 = vmatprep.subr.bf16.mxu0 0
    %829 = vmatpush1.bf16.msra.mxu0 %v790
    %830 = vmatprep.subr.bf16.mxu0 0
    %831 = vmatpush1.bf16.msra.mxu0 %v791
    %832 = vmatprep.subr.bf16.mxu0 0
    %833 = vmatpush1.bf16.msra.mxu0 %v792
    %834 = vmatprep.subr.bf16.mxu0 0
    %835 = vmatpush1.bf16.msra.mxu0 %v793
    %836 = vmatprep.subr.bf16.mxu0 0
    %837 = vmatpush1.bf16.msra.mxu0 %v794
    %838 = vmatprep.subr.bf16.mxu0 0
    %839 = vmatpush1.bf16.msra.mxu0 %v795
    %840 = vmatprep.subr.bf16.mxu0 0
    %841 = vmatpush1.bf16.msra.mxu0 %v796
    %842 = vmatprep.subr.bf16.mxu0 0
    %843 = vmatpush1.bf16.msra.mxu0 %v797
    %844 = vmatprep.subr.bf16.mxu0 0
    %845 = vmatpush1.bf16.msra.mxu0 %v798
    %846 = vmatprep.subr.bf16.mxu0 0
    %847 = vmatpush1.bf16.msra.mxu0 %v799
    %848 = vmatprep.mubr.bf16.mxu0 %v666
    %849 = vmatmul.mubr.bf16.gmra.mrb[0].mxu0 %v665
    %v850 = vpop.f32.mrb[0].mxu0
    %v851 = vadd.f32 %v718, %v850
    %v852 = vpop.f32.mrb[0].mxu0
    %v853 = vpop.f32.mrb[0].mxu0
    %v854 = vadd.f32 %v718, %v853
    %v855 = vpop.f32.mrb[0].mxu0
    %856 = vmatprep.mubr.bf16.mxu0 %v668
    %857 = vmatmul.mubr.bf16.gmra.mrb[0].mxu0 %v667
    %v858 = vpop.f32.mrb[0].mxu0
    %v859 = vadd.f32 %v718, %v858
    %v860 = vpop.f32.mrb[0].mxu0
    %v861 = vpop.f32.mrb[0].mxu0
    %v862 = vadd.f32 %v718, %v861
    %v863 = vpop.f32.mrb[0].mxu0
    %864 = vmatprep.mubr.bf16.mxu0 %v670
    %865 = vmatmul.mubr.bf16.gmra.mrb[0].mxu0 %v669
    %v866 = vpop.f32.mrb[0].mxu0
    %v867 = vadd.f32 %v718, %v866
    %v868 = vpop.f32.mrb[0].mxu0
    %v869 = vpop.f32.mrb[0].mxu0
    %v870 = vadd.f32 %v718, %v869
    %v871 = vpop.f32.mrb[0].mxu0
    %872 = vmatprep.mubr.bf16.mxu0 %v672
    %873 = vmatmul.mubr.bf16.gmra.mrb[0].mxu0 %v671
    %v874 = vpop.f32.mrb[0].mxu0
    %v875 = vadd.f32 %v718, %v874
    %v876 = vpop.f32.mrb[0].mxu0
    %v877 = vpop.f32.mrb[0].mxu0
    %v878 = vadd.f32 %v718, %v877
    %v879 = vpop.f32.mrb[0].mxu0
    %880 = vmatprep.mubr.bf16.mxu0 %v674
    %881 = vmatmul.mubr.bf16.gmra.mrb[0].mxu0 %v673
    %v882 = vpop.f32.mrb[0].mxu0
    %v883 = vadd.f32 %v718, %v882
    %v884 = vpop.f32.mrb[0].mxu0
    %v885 = vpop.f32.mrb[0].mxu0
    %v886 = vadd.f32 %v718, %v885
    %v887 = vpop.f32.mrb[0].mxu0
    %888 = vmatprep.mubr.bf16.mxu0 %v676
    %889 = vmatmul.mubr.bf16.gmra.mrb[0].mxu0 %v675
    %v890 = vpop.f32.mrb[0].mxu0
    %v891 = vadd.f32 %v718, %v890
    %v892 = vpop.f32.mrb[0].mxu0
    %v893 = vpop.f32.mrb[0].mxu0
    %v894 = vadd.f32 %v718, %v893
    %v895 = vpop.f32.mrb[0].mxu0
    %896 = vmatprep.mubr.bf16.mxu0 %v678
    %897 = vmatmul.mubr.bf16.gmra.mrb[0].mxu0 %v677
    %v898 = vpop.f32.mrb[0].mxu0
    %v899 = vadd.f32 %v718, %v898
    %v900 = vpop.f32.mrb[0].mxu0
    %v901 = vpop.f32.mrb[0].mxu0
    %v902 = vadd.f32 %v718, %v901
    %v903 = vpop.f32.mrb[0].mxu0
    %904 = vmatprep.mubr.bf16.mxu0 %v680
    %905 = vmatmul.mubr.bf16.gmra.mrb[0].mxu0 %v679
    %v906 = vpop.f32.mrb[0].mxu0
    %v907 = vadd.f32 %v718, %v906
    %v908 = vpop.f32.mrb[0].mxu0
    %v909 = vpop.f32.mrb[0].mxu0
    %v910 = vadd.f32 %v718, %v909
    %v911 = vpop.f32.mrb[0].mxu0
    %912 = vdwg.mxu0
    %v913 = vmax.f32 %v851, 0.0
    %v914 = vmax.f32 %v854, 0.0
    %v915 = vmax.f32 %v859, 0.0
    %v916 = vmax.f32 %v862, 0.0
    %v917 = vmax.f32 %v867, 0.0
    %v918 = vmax.f32 %v870, 0.0
    %v919 = vmax.f32 %v875, 0.0
    %v920 = vmax.f32 %v878, 0.0
    %v921 = vmax.f32 %v883, 0.0
    %v922 = vmax.f32 %v886, 0.0
    %v923 = vmax.f32 %v891, 0.0
    %v924 = vmax.f32 %v894, 0.0
    %v925 = vmax.f32 %v899, 0.0
    %v926 = vmax.f32 %v902, 0.0
    %v927 = vmax.f32 %v907, 0.0
    %v928 = vmax.f32 %v910, 0.0
    %v929 = vpack.c.bf16 %v914, %v913
    %v930 = vpack.c.bf16 %v916, %v915
    %v931 = vpack.c.bf16 %v918, %v917
    %v932 = vpack.c.bf16 %v920, %v919
    %v933 = vpack.c.bf16 %v922, %v921
    %v934 = vpack.c.bf16 %v924, %v923
    %v935 = vpack.c.bf16 %v926, %v925
    %v936 = vpack.c.bf16 %v928, %v927
    %v937 = vld [vmem:[#allocation6] sm:$0xf]
    %v938 = vld [vmem:[#allocation6 + $0x4] sm:$0xf]
    %v939 = vld [vmem:[#allocation6 + $0x8] sm:$0xf]
    %v940 = vld [vmem:[#allocation6 + $0xc] sm:$0xf]
    %v941 = vld [vmem:[#allocation6 + $0x10] sm:$0xf]
    %v942 = vld [vmem:[#allocation6 + $0x14] sm:$0xf]
    %v943 = vld [vmem:[#allocation6 + $0x18] sm:$0xf]
    %v944 = vld [vmem:[#allocation6 + $0x1c] sm:$0xf]
    %v945 = vld [vmem:[#allocation6 + $0x20] sm:$0xf]
    %v946 = vld [vmem:[#allocation6 + $0x24] sm:$0xf]
    %v947 = vld [vmem:[#allocation6 + $0x28] sm:$0xf]
    %v948 = vld [vmem:[#allocation6 + $0x2c] sm:$0xf]
    %v949 = vld [vmem:[#allocation6 + $0x30] sm:$0xf]
    %v950 = vld [vmem:[#allocation6 + $0x34] sm:$0xf]
    %v951 = vld [vmem:[#allocation6 + $0x38] sm:$0xf]
    %v952 = vld [vmem:[#allocation6 + $0x3c] sm:$0xf]
    %v953 = vld [vmem:[%s8] sm:$0x1]
    %v955 = vlaneseq
    %v956 = vshrl.u32 %v955, 7
    %v957 = vsub.s32 0, %v956
    %v958 = vrot.slane %v953, %v957
    %v976 = vunpack.c.l.b16 %v937
    %v977 = vunpack.c.l.b16 %v938
    %v978 = vunpack.c.l.b16 %v939
    %v979 = vunpack.c.l.b16 %v940
    %v980 = vunpack.c.l.b16 %v941
    %v981 = vunpack.c.l.b16 %v942
    %v982 = vunpack.c.l.b16 %v943
    %v983 = vunpack.c.l.b16 %v944
    %v984 = vunpack.c.l.b16 %v945
    %v985 = vunpack.c.l.b16 %v946
    %v986 = vunpack.c.l.b16 %v947
    %v987 = vunpack.c.l.b16 %v948
    %v988 = vunpack.c.l.b16 %v949
    %v989 = vunpack.c.l.b16 %v950
    %v990 = vunpack.c.l.b16 %v951
    %v991 = vunpack.c.l.b16 %v952
    %v992 = vpack.c.b16 %v977, %v976
    %v993 = vpack.c.b16 %v979, %v978
    %v994 = vpack.c.b16 %v981, %v980
    %v995 = vpack.c.b16 %v983, %v982
    %v996 = vpack.c.b16 %v985, %v984
    %v997 = vpack.c.b16 %v987, %v986
    %v998 = vpack.c.b16 %v989, %v988
    %v999 = vpack.c.b16 %v991, %v990
    %1008 = vmatprep.subr.bf16.mxu0 0
    %1009 = vmatpush1.bf16.msra.mxu0 %v992
    %1010 = vmatprep.subr.bf16.mxu0 0
    %1011 = vmatpush1.bf16.msra.mxu0 %v993
    %1012 = vmatprep.subr.bf16.mxu0 0
    %1013 = vmatpush1.bf16.msra.mxu0 %v994
    %1014 = vmatprep.subr.bf16.mxu0 0
    %1015 = vmatpush1.bf16.msra.mxu0 %v995
    %1016 = vmatprep.subr.bf16.mxu0 0
    %1017 = vmatpush1.bf16.msra.mxu0 %v996
    %1018 = vmatprep.subr.bf16.mxu0 0
    %1019 = vmatpush1.bf16.msra.mxu0 %v997
    %1020 = vmatprep.subr.bf16.mxu0 0
    %1021 = vmatpush1.bf16.msra.mxu0 %v998
    %1022 = vmatprep.subr.bf16.mxu0 0
    %1023 = vmatpush1.bf16.msra.mxu0 %v999
    %1024 = vmatprep.subr.bf16.mxu0 0
    %1025 = vmatpush1.bf16.msra.mxu0 0
    %1026 = vmatprep.subr.bf16.mxu0 0
    %1027 = vmatpush1.bf16.msra.mxu0 0
    %1028 = vmatprep.subr.bf16.mxu0 0
    %1029 = vmatpush1.bf16.msra.mxu0 0
    %1030 = vmatprep.subr.bf16.mxu0 0
    %1031 = vmatpush1.bf16.msra.mxu0 0
    %1032 = vmatprep.subr.bf16.mxu0 0
    %1033 = vmatpush1.bf16.msra.mxu0 0
    %1034 = vmatprep.subr.bf16.mxu0 0
    %1035 = vmatpush1.bf16.msra.mxu0 0
    %1036 = vmatprep.subr.bf16.mxu0 0
    %1037 = vmatpush1.bf16.msra.mxu0 0
    %1038 = vmatprep.subr.bf16.mxu0 0
    %1039 = vmatpush1.bf16.msra.mxu0 0
    %1040 = vmatprep.mubr.bf16.mxu0 0
    %1041 = vmatmul.mubr.bf16.gmra.mrb[0].mxu0 %v929
    %v1042 = vpop.f32.mrb[0].mxu0
    %v1043 = vadd.f32 %v958, %v1042
    %v1044 = vpop.f32.mrb[0].mxu0
    %v1045 = vpop.f32.mrb[0].mxu0
    %v1046 = vadd.f32 %v958, %v1045
    %v1047 = vpop.f32.mrb[0].mxu0
    %1048 = vmatprep.mubr.bf16.mxu0 0
    %1049 = vmatmul.mubr.bf16.gmra.mrb[0].mxu0 %v930
    %v1050 = vpop.f32.mrb[0].mxu0
    %v1051 = vadd.f32 %v958, %v1050
    %v1052 = vpop.f32.mrb[0].mxu0
    %v1053 = vpop.f32.mrb[0].mxu0
    %v1054 = vadd.f32 %v958, %v1053
    %v1055 = vpop.f32.mrb[0].mxu0
    %1056 = vmatprep.mubr.bf16.mxu0 0
    %1057 = vmatmul.mubr.bf16.gmra.mrb[0].mxu0 %v931
    %v1058 = vpop.f32.mrb[0].mxu0
    %v1059 = vadd.f32 %v958, %v1058
    %v1060 = vpop.f32.mrb[0].mxu0
    %v1061 = vpop.f32.mrb[0].mxu0
    %v1062 = vadd.f32 %v958, %v1061
    %v1063 = vpop.f32.mrb[0].mxu0
    %1064 = vmatprep.mubr.bf16.mxu0 0
    %1065 = vmatmul.mubr.bf16.gmra.mrb[0].mxu0 %v932
    %v1066 = vpop.f32.mrb[0].mxu0
    %v1067 = vadd.f32 %v958, %v1066
    %v1068 = vpop.f32.mrb[0].mxu0
    %v1069 = vpop.f32.mrb[0].mxu0
    %v1070 = vadd.f32 %v958, %v1069
    %v1071 = vpop.f32.mrb[0].mxu0
    %1072 = vmatprep.mubr.bf16.mxu0 0
    %1073 = vmatmul.mubr.bf16.gmra.mrb[0].mxu0 %v933
    %v1074 = vpop.f32.mrb[0].mxu0
    %v1075 = vadd.f32 %v958, %v1074
    %v1076 = vpop.f32.mrb[0].mxu0
    %v1077 = vpop.f32.mrb[0].mxu0
    %v1078 = vadd.f32 %v958, %v1077
    %v1079 = vpop.f32.mrb[0].mxu0
    %1080 = vmatprep.mubr.bf16.mxu0 0
    %1081 = vmatmul.mubr.bf16.gmra.mrb[0].mxu0 %v934
    %v1082 = vpop.f32.mrb[0].mxu0
    %v1083 = vadd.f32 %v958, %v1082
    %v1084 = vpop.f32.mrb[0].mxu0
    %v1085 = vpop.f32.mrb[0].mxu0
    %v1086 = vadd.f32 %v958, %v1085
    %v1087 = vpop.f32.mrb[0].mxu0
    %1088 = vmatprep.mubr.bf16.mxu0 0
    %1089 = vmatmul.mubr.bf16.gmra.mrb[0].mxu0 %v935
    %v1090 = vpop.f32.mrb[0].mxu0
    %v1091 = vadd.f32 %v958, %v1090
    %v1092 = vpop.f32.mrb[0].mxu0
    %v1093 = vpop.f32.mrb[0].mxu0
    %v1094 = vadd.f32 %v958, %v1093
    %v1095 = vpop.f32.mrb[0].mxu0
    %1096 = vmatprep.mubr.bf16.mxu0 0
    %1097 = vmatmul.mubr.bf16.gmra.mrb[0].mxu0 %v936
    %v1098 = vpop.f32.mrb[0].mxu0
    %v1099 = vadd.f32 %v958, %v1098
    %v1100 = vpop.f32.mrb[0].mxu0
    %v1101 = vpop.f32.mrb[0].mxu0
    %v1102 = vadd.f32 %v958, %v1101
    %v1103 = vpop.f32.mrb[0].mxu0
    %1104 = vdwg.mxu0
    %v1105 = vmax.f32 %v1043, 0.0
    %v1106 = vmax.f32 %v1046, 0.0
    %v1107 = vmax.f32 %v1051, 0.0
    %v1108 = vmax.f32 %v1054, 0.0
    %v1109 = vmax.f32 %v1059, 0.0
    %v1110 = vmax.f32 %v1062, 0.0
    %v1111 = vmax.f32 %v1067, 0.0
    %v1112 = vmax.f32 %v1070, 0.0
    %v1113 = vmax.f32 %v1075, 0.0
    %v1114 = vmax.f32 %v1078, 0.0
    %v1115 = vmax.f32 %v1083, 0.0
    %v1116 = vmax.f32 %v1086, 0.0
    %v1117 = vmax.f32 %v1091, 0.0
    %v1118 = vmax.f32 %v1094, 0.0
    %v1119 = vmax.f32 %v1099, 0.0
    %v1120 = vmax.f32 %v1102, 0.0
    %1121 = vxpose.xlu0.b32.start [1/16] %v1105, 128
    %1122 = vxpose.xlu0.b32.cont [2/16] %v1106, 128
    %1123 = vxpose.xlu0.b32.cont [3/16] %v1107, 128
    %1124 = vxpose.xlu0.b32.cont [4/16] %v1108, 128
    %1125 = vxpose.xlu0.b32.cont [5/16] %v1109, 128
    %1126 = vxpose.xlu0.b32.cont [6/16] %v1110, 128
    %1127 = vxpose.xlu0.b32.cont [7/16] %v1111, 128
    %1128 = vxpose.xlu0.b32.cont [8/16] %v1112, 128
    %1129 = vxpose.xlu0.b32.cont [9/16] %v1113, 128
    %1130 = vxpose.xlu0.b32.cont [10/16] %v1114, 128
    %1131 = vxpose.xlu0.b32.cont [11/16] %v1115, 128
    %1132 = vxpose.xlu0.b32.cont [12/16] %v1116, 128
    %1133 = vxpose.xlu0.b32.cont [13/16] %v1117, 128
    %1134 = vxpose.xlu0.b32.cont [14/16] %v1118, 128
    %1135 = vxpose.xlu0.b32.cont [15/16] %v1119, 128
    %1136 = vxpose.xlu0.b32.end [16/16] %v1120, 128
    %v1137 = vpop.trf.xlu0
    %v1138 = vpop.trf.xlu0
    %v1139 = vpop.trf.xlu0
    %v1140 = vpop.trf.xlu0
    %v1141 = vpop.trf.xlu0
    %v1142 = vpop.trf.xlu0
    %v1143 = vpop.trf.xlu0
    %v1144 = vpop.trf.xlu0
    %v1145 = vpop.trf.xlu0
    %v1146 = vpop.trf.xlu0
    %v1147 = vpop.trf.xlu0
    %v1148 = vpop.trf.xlu0
    %v1149 = vpop.trf.xlu0
    %v1150 = vpop.trf.xlu0
    %v1151 = vpop.trf.xlu0
    %v1152 = vpop.trf.xlu0
    %v1153 = vld [vmem:[%s9] sm:$0xff]
    %v1154 = vld [vmem:[%s9 + $0x8] sm:$0xff]
    %v1155 = vld [vmem:[%s9 + $0x10] sm:$0xff]
    %v1156 = vld [vmem:[%s9 + $0x18] sm:$0xff]
    %v1157 = vld [vmem:[%s9 + $0x20] sm:$0xff]
    %v1158 = vld [vmem:[%s9 + $0x28] sm:$0xff]
    %v1159 = vld [vmem:[%s9 + $0x30] sm:$0xff]
    %v1160 = vld [vmem:[%s9 + $0x38] sm:$0xff]
    %v1161 = vld [vmem:[%s9 + $0x40] sm:$0xff]
    %v1162 = vld [vmem:[%s9 + $0x48] sm:$0xff]
    %v1163 = vld [vmem:[%s9 + $0x50] sm:$0xff]
    %v1164 = vld [vmem:[%s9 + $0x58] sm:$0xff]
    %v1165 = vld [vmem:[%s9 + $0x60] sm:$0xff]
    %v1166 = vld [vmem:[%s9 + $0x68] sm:$0xff]
    %v1167 = vld [vmem:[%s9 + $0x70] sm:$0xff]
    %v1168 = vld [vmem:[%s9 + $0x78] sm:$0xff]
    %1170 = vset.pattern.permute.xlu0 0
    %1171 = vperm.xlu0 %1170, %v1153
    %v1172 = vpop.permute.xlu0 %1171
    %1175 = vset.pattern.permute.xlu0 0
    %1176 = vperm.xlu0 %1175, %v1154
    %v1177 = vpop.permute.xlu0 %1176
    %1180 = vset.pattern.permute.xlu0 0
    %1181 = vperm.xlu0 %1180, %v1155
    %v1182 = vpop.permute.xlu0 %1181
    %1185 = vset.pattern.permute.xlu0 0
    %1186 = vperm.xlu0 %1185, %v1156
    %v1187 = vpop.permute.xlu0 %1186
    %1190 = vset.pattern.permute.xlu0 0
    %1191 = vperm.xlu0 %1190, %v1157
    %v1192 = vpop.permute.xlu0 %1191
    %1195 = vset.pattern.permute.xlu0 0
    %1196 = vperm.xlu0 %1195, %v1158
    %v1197 = vpop.permute.xlu0 %1196
    %1200 = vset.pattern.permute.xlu0 0
    %1201 = vperm.xlu0 %1200, %v1159
    %v1202 = vpop.permute.xlu0 %1201
    %1205 = vset.pattern.permute.xlu0 0
    %1206 = vperm.xlu0 %1205, %v1160
    %v1207 = vpop.permute.xlu0 %1206
    %1210 = vset.pattern.permute.xlu0 0
    %1211 = vperm.xlu0 %1210, %v1161
    %v1212 = vpop.permute.xlu0 %1211
    %1215 = vset.pattern.permute.xlu0 0
    %1216 = vperm.xlu0 %1215, %v1162
    %v1217 = vpop.permute.xlu0 %1216
    %1220 = vset.pattern.permute.xlu0 0
    %1221 = vperm.xlu0 %1220, %v1163
    %v1222 = vpop.permute.xlu0 %1221
    %1225 = vset.pattern.permute.xlu0 0
    %1226 = vperm.xlu0 %1225, %v1164
    %v1227 = vpop.permute.xlu0 %1226
    %1230 = vset.pattern.permute.xlu0 0
    %1231 = vperm.xlu0 %1230, %v1165
    %v1232 = vpop.permute.xlu0 %1231
    %1235 = vset.pattern.permute.xlu0 0
    %1236 = vperm.xlu0 %1235, %v1166
    %v1237 = vpop.permute.xlu0 %1236
    %1240 = vset.pattern.permute.xlu0 0
    %1241 = vperm.xlu0 %1240, %v1167
    %v1242 = vpop.permute.xlu0 %1241
    %1245 = vset.pattern.permute.xlu0 0
    %1246 = vperm.xlu0 %1245, %v1168
    %v1247 = vpop.permute.xlu0 %1246
    %v1249 = vmul.f32 %v1137, %v1172
    %v1250 = vmul.f32 %v1138, %v1177
    %v1251 = vmul.f32 %v1139, %v1182
    %v1252 = vmul.f32 %v1140, %v1187
    %v1253 = vmul.f32 %v1141, %v1192
    %v1254 = vmul.f32 %v1142, %v1197
    %v1255 = vmul.f32 %v1143, %v1202
    %v1256 = vmul.f32 %v1144, %v1207
    %v1257 = vmul.f32 %v1145, %v1212
    %v1258 = vmul.f32 %v1146, %v1217
    %v1259 = vmul.f32 %v1147, %v1222
    %v1260 = vmul.f32 %v1148, %v1227
    %v1261 = vmul.f32 %v1149, %v1232
    %v1262 = vmul.f32 %v1150, %v1237
    %v1263 = vmul.f32 %v1151, %v1242
    %v1264 = vmul.f32 %v1152, %v1247
    %v1265 = vadd.f32 %v1249, %v1250
    %v1266 = vadd.f32 %v1265, %v1251
    %v1267 = vadd.f32 %v1266, %v1252
    %v1268 = vadd.f32 %v1267, %v1253
    %v1269 = vadd.f32 %v1268, %v1254
    %v1270 = vadd.f32 %v1269, %v1255
    %v1271 = vadd.f32 %v1270, %v1256
    %v1272 = vadd.f32 %v1271, %v1257
    %v1273 = vadd.f32 %v1272, %v1258
    %v1274 = vadd.f32 %v1273, %v1259
    %v1275 = vadd.f32 %v1274, %v1260
    %v1276 = vadd.f32 %v1275, %v1261
    %v1277 = vadd.f32 %v1276, %v1262
    %v1278 = vadd.f32 %v1277, %v1263
    %v1279 = vadd.f32 %v1278, %v1264
    %v1280 = vrot.slane %v1279, 4
    %v1281 = vadd.f32 %v1279, %v1280
    %v1282 = vrot.slane %v1281, 2
    %v1283 = vadd.f32 %v1281, %v1282
    %v1284 = vrot.slane %v1283, 1
    %v1285 = vadd.f32 %v1283, %v1284
    %v1286 = vld [vmem:[#allocation2] sm:$0x1]
    %1288 = vset.pattern.permute.xlu0 0
    %1289 = vperm.xlu0 %1288, %v1286
    %v1290 = vpop.permute.xlu0 %1289
    %v1292 = vlaneseq
    %v1293 = vshrl.u32 %v1292, 7
    %v1294 = vsub.s32 0, %v1293
    %v1295 = vrot.slane %v1290, %v1294
    %v1296 = vadd.f32 %v1285, %v1295
    %1297 = vst [vmem:[#allocation8] sm:$0x1] %v1296
    // Predicated region
    $region54: #{tpu_custom_call.1} parent=1 // pred_check
      _
    $region55: #{tpu_custom_call.1} parent=1 // pred_check_branch
      %1299 = sbr.rel (0) target = $region57
    $region56: #{tpu_custom_call.1} parent=1 // pred_region
      %s1301 = ssub.s32 16, 16
      %1302 = vsyncadd [#allocation5], %s1301
      %s1304 = sshll.u32 [#allocation8], 4
      %s1305 = int_to_ptr.vmem [resolvable:$true] %s1304
      %1307 = dma.vmem_to_hbm [thread:$0]  %s1305, 16, %s11, [#allocation5]
    $region57: #{tpu_custom_call.1} parent=1 // pred_fallthru
      _
    // Predicated region
    $region58: #{tpu_custom_call.1} parent=1 // pred_check
      _
    $region59: #{tpu_custom_call.1} parent=1 // pred_check_branch
      %1309 = sbr.rel (0) target = $region61
    $region60: #{tpu_custom_call.1} parent=1 // pred_region
      %1310 = dma.done [#allocation5], 16
    $region61: #{tpu_custom_call.1} parent=1 // pred_fallthru
      _
    %1311 = vsyncpa [#allocation4], 1
    %1312 = vsyncpa [#allocation7], 1
    %1313 = vsyncpa [#allocation5], 1

</llo_original>
